<compile_context>
chip_gen: v6e
topology: v6e:2x2x1
jax: 0.10.0
libtpu: 0.0.40
codegen_flags: <defaults>
</compile_context>

<pallas_src>
import functools

import jax
import jax.numpy as jnp
from jax import lax
from jax.experimental import pallas as pl
from jax.experimental.pallas import tpu as pltpu


def _round_up(x, m):
    return ((x + m - 1) // m) * m


@functools.lru_cache(maxsize=1)
def _budgets():
    """(A-tile byte cap, vmem_limit_bytes), tuned per TPU generation."""
    try:
        vmem = int(pltpu.get_tpu_info().vmem_capacity_bytes)
    except Exception:
        vmem = 64 * 1024 * 1024
    if vmem >= 100 * 1024 * 1024:                 # v5e / v6e: 128 MiB VMEM
        return 8 * 1024 * 1024, 96 * 1024 * 1024
    return 4 * 1024 * 1024, 40 * 1024 * 1024      # v7x (64 MiB) / unknown


# ----------------------------------------------------------------------------
# Pallas kernel 1: fused GEMM (bf16 MXU) + bias + optional residual + ReLU
# ----------------------------------------------------------------------------
def _gemm_bias_act_kernel(a_ref, w_ref, b_ref, *rest, relu, has_res):
    if has_res:
        r_ref, o_ref = rest
    else:
        (o_ref,) = rest
    acc = jnp.dot(a_ref[...], w_ref[...], preferred_element_type=jnp.float32)
    acc = acc + b_ref[...]
    if has_res:
        acc = acc + r_ref[...].astype(jnp.float32)
    if relu:
        acc = jnp.maximum(acc, 0.0)
    o_ref[...] = acc.astype(o_ref.dtype)


_TM_CANDIDATES = (1024, 512, 256, 128, 64, 32, 16, 8)


def _pick_tm(m, k, bytes_cap):
    """Largest candidate M-tile whose bf16 A tile fits the cap (never returns m)."""
    for t in _TM_CANDIDATES:
        if t <= max(8, m) and t * k * 2 <= bytes_cap:
            return t
    return 8


def _maybe_buffered_spec(block_shape, index_map, deep):
    """W spec; 3-deep buffering on the streamed operand for small-M layers."""
    if deep and hasattr(pl, "Buffered"):
        try:
            return pl.BlockSpec(block_shape, index_map, pipeline_mode=pl.Buffered(3))
        except TypeError:
            pass
    return pl.BlockSpec(block_shape, index_map)


def fused_matmul(a, w, bias, residual=None, relu=True, out_dtype=jnp.bfloat16,
                 keep_padded_cols=False):
    """out = act((a @ w) + bias (+ residual)); bf16 MXU operands, f32 epilogue.

    Output columns are zero-padded to a multiple of 128 for lane-dense stores;
    with keep_padded_cols=True the padded columns are kept flowing (the next
    conv zero-pads its K rows instead, which is mathematically identical).
    """
    m, k = a.shape
    k2, ncols = w.shape
    assert k == k2

    a = a.astype(jnp.bfloat16)
    w = w.astype(jnp.bfloat16)
    b2 = bias.reshape(1, ncols).astype(jnp.float32)

    np_ = _round_up(ncols, 128)
    if np_ != ncols:
        w = jnp.pad(w, ((0, 0), (0, np_ - ncols)))
        b2 = jnp.pad(b2, ((0, 0), (0, np_ - ncols)))

    bytes_cap, vmem_limit = _budgets()
    tn = 256 if np_ % 256 == 0 else 128
    tm = _pick_tm(m, k, bytes_cap)
    mp = _round_up(m, tm)
    if mp != m:
        a = jnp.pad(a, ((0, mp - m), (0, 0)))

    has_res = residual is not None
    args = [a, w, b2]
    if has_res:
        r = residual
        if np_ != ncols:
            r = jnp.pad(r, ((0, 0), (0, np_ - ncols)))
        if mp != m:
            r = jnp.pad(r, ((0, mp - m), (0, 0)))
        args.append(r)

    grid_m, grid_n = mp // tm, np_ // tn

    if grid_m == 1:
        # Deep / small-M layers: A fits one resident block.  Make the Cout-tile
        # axis the (only) grid axis so both v7x TensorCores get work, and deepen
        # buffering on W -- the only streamed operand.
        grid = (grid_n,)
        a_spec = pl.BlockSpec((tm, k), lambda j: (0, 0))
        w_spec = _maybe_buffered_spec((k, tn), lambda j: (0, j), grid_n >= 3)
        b_spec = pl.BlockSpec((1, tn), lambda j: (0, j))
        r_spec = pl.BlockSpec((tm, tn), lambda j: (0, j))
        o_spec = pl.BlockSpec((tm, tn), lambda j: (0, j))
        dims = ("parallel",)
    else:
        grid = (grid_m, grid_n)
        a_spec = pl.BlockSpec((tm, k), lambda i, j: (i, 0))
        w_spec = pl.BlockSpec((k, tn), lambda i, j: (0, j))
        b_spec = pl.BlockSpec((1, tn), lambda i, j: (0, j))
        r_spec = pl.BlockSpec((tm, tn), lambda i, j: (i, j))
        o_spec = pl.BlockSpec((tm, tn), lambda i, j: (i, j))
        dims = ("parallel", "parallel")

    in_specs = [a_spec, w_spec, b_spec] + ([r_spec] if has_res else [])
    kernel = functools.partial(_gemm_bias_act_kernel, relu=relu, has_res=has_res)
    out = pl.pallas_call(
        kernel,
        out_shape=jax.ShapeDtypeStruct((mp, np_), out_dtype),
        grid=grid,
        in_specs=in_specs,
        out_specs=o_spec,
        compiler_params=pltpu.CompilerParams(
            dimension_semantics=dims, vmem_limit_bytes=vmem_limit),
    )(*args)
    if mp != m:
        out = out[:m]
    if np_ != ncols and not keep_padded_cols:
        out = out[:, :ncols]
    return out


# ----------------------------------------------------------------------------
# Pallas kernel 2: 3x3 / stride-1 conv via in-kernel tap accumulation
# (no im2col materialization in HBM; 9 shifted contiguous slices of the flat,
#  H-padded image feed 9 MXU matmuls accumulated in f32)
# ----------------------------------------------------------------------------
def _conv3x3_tap_kernel(x_ref, w_ref, b_ref, o_ref, *, width, relu):
    # x_ref: (1, (H+2)*W + 2, Cin) bf16 -- H zero-padded, flattened, plus one
    #        leading/trailing zero row so tap (di, dj) is rows[di*W+dj : +H*W].
    # w_ref: (9, Cin, tn) bf16;  b_ref: (1, tn) f32;  o_ref: (1, H*W, tn)
    m = o_ref.shape[1]
    tn = o_ref.shape[2]
    col = lax.broadcasted_iota(jnp.int32, (m, 1), 0)
    if (width & (width - 1)) == 0:
        col = col & (width - 1)
    else:
        col = col % width
    left_ok = col != 0            # dj == 0 taps wrap around the left edge
    right_ok = col != width - 1   # dj == 2 taps wrap around the right edge

    acc = jnp.zeros((m, tn), jnp.float32)
    for t in range(9):
        di, dj = divmod(t, 3)
        off = di * width + dj
        a = x_ref[0, off:off + m, :]
        if dj == 0:
            a = jnp.where(left_ok, a, jnp.zeros_like(a))
        elif dj == 2:
            a = jnp.where(right_ok, a, jnp.zeros_like(a))
        acc = acc + jnp.dot(a, w_ref[t], preferred_element_type=jnp.float32)
    acc = acc + b_ref[...]
    if relu:
        acc = jnp.maximum(acc, 0.0)
    o_ref[0] = acc.astype(o_ref.dtype)


def conv3x3_tap(x, w, bias, relu=True, out_dtype=jnp.bfloat16):
    """3x3 / stride-1 / pad-1 conv (BN folded into w/bias), NHWC in/out."""
    n, h, wd, cin = x.shape
    assert w.shape[:3] == (3, 3, cin)
    cout = w.shape[3]
    coutp = _round_up(cout, 128)
    wm = w.reshape(9, cin, cout).astype(jnp.bfloat16)
    b2 = bias.reshape(1, cout).astype(jnp.float32)
    if coutp != cout:
        wm = jnp.pad(wm, ((0, 0), (0, 0), (0, coutp - cout)))
        b2 = jnp.pad(b2, ((0, 0), (0, coutp - cout)))
    tn = 256 if coutp % 256 == 0 else 128

    # Pad H by one zero row on each side, flatten (H, W), add one extra
    # leading/trailing zero row (XLA fuses these pads into a single copy).
    xp = jnp.pad(x.astype(jnp.bfloat16), ((0, 0), (1, 1), (0, 0), (0, 0)))
    xf = jnp.pad(xp.reshape(n, (h + 2) * wd, cin), ((0, 0), (1, 1), (0, 0)))
    rows = (h + 2) * wd + 2
    m = h * wd

    kernel = functools.partial(_conv3x3_tap_kernel, width=wd, relu=relu)
    out = pl.pallas_call(
        kernel,
        out_shape=jax.ShapeDtypeStruct((n, m, coutp), out_dtype),
        grid=(n, coutp // tn),
        in_specs=[
            pl.BlockSpec((1, rows, cin), lambda i, j: (i, 0, 0)),
            pl.BlockSpec((9, cin, tn), lambda i, j: (0, 0, j)),
            pl.BlockSpec((1, tn), lambda i, j: (0, j)),
        ],
        out_specs=pl.BlockSpec((1, m, tn), lambda i, j: (i, 0, j)),
        compiler_params=pltpu.CompilerParams(
            dimension_semantics=("parallel", "parallel"),
            vmem_limit_bytes=_budgets()[1]),
    )(xf, wm, b2)
    return out.reshape(n, h, wd, coutp)


# ----------------------------------------------------------------------------
# Conv dispatch (+ BN folded, + fused residual / ReLU epilogue)
# ----------------------------------------------------------------------------
def conv_bn_act(x, w, bias, stride=1, padding=0, relu=True, residual=None,
                out_dtype=jnp.bfloat16):
    """x: (N,H,W,Cin) NHWC; w: (kh,kw,Cin,Cout) with BN scale already folded.
    Activations may carry zero-padded channels; the weight's input channels are
    zero-padded to match (mathematically identical, keeps K lane-dense)."""
    kh, kw, cin_w, cout = w.shape
    n, h, wd, cx = x.shape
    if cx != cin_w:
        assert cx > cin_w
        w = jnp.pad(w, ((0, 0), (0, 0), (0, cx - cin_w), (0, 0)))
    ho = (h + 2 * padding - kh) // stride + 1
    wo = (wd + 2 * padding - kw) // stride + 1

    if kh == 3 and kw == 3 and stride == 1 and padding == 1 and residual is None:
        coutp = _round_up(cout, 128)
        tn = 256 if coutp % 256 == 0 else 128
        per_step = (((h + 2) * wd + 2) * cx * 2 + 9 * cx * tn * 2
                    + h * wd * tn * jnp.dtype(out_dtype).itemsize)
        if 2 * per_step <= int(0.6 * _budgets()[1]):
            return conv3x3_tap(x, w, bias, relu=relu, out_dtype=out_dtype)
        # TODO(synk): tile the flat-image tap kernel over output rows instead
        # of falling back to im2col when one image does not fit in VMEM.

    if kh == 1 and kw == 1 and padding == 0:
        a = x[:, ::stride, ::stride, :].reshape(n * ho * wo, cx)
    else:
        # im2col fallback: only the 7x7 stem and the three stride-2 3x3 convs.
        # TODO(synk): extend in-kernel tap accumulation to strided convs/stem.
        xp = jnp.pad(x, ((0, 0), (padding, padding), (padding, padding), (0, 0)))
        cols = [xp[:, i:i + (ho - 1) * stride + 1:stride,
                   j:j + (wo - 1) * stride + 1:stride, :]
                for i in range(kh) for j in range(kw)]
        a = jnp.stack(cols, axis=3).reshape(n * ho * wo, kh * kw * cx)
    wm = w.reshape(kh * kw * cx, cout)
    res = None if residual is None else residual.reshape(n * ho * wo,
                                                         residual.shape[-1])
    out = fused_matmul(a, wm, bias, residual=res, relu=relu,
                       out_dtype=out_dtype, keep_padded_cols=True)
    return out.reshape(n, ho, wo, out.shape[-1])


def max_pool_3x3_s2_p1(x):
    # TODO(synk): single-pass Pallas max-pool fused with the stem output.
    n, h, wd, c = x.shape
    ho = (h + 2 - 3) // 2 + 1
    wo = (wd + 2 - 3) // 2 + 1
    xp = jnp.pad(x, ((0, 0), (1, 1), (1, 1), (0, 0)), constant_values=-jnp.inf)
    out = None
    for i in range(3):
        for j in range(3):
            s = xp[:, i:i + (ho - 1) * 2 + 1:2, j:j + (wo - 1) * 2 + 1:2, :]
            out = s if out is None else jnp.maximum(out, s)
    return out


def upscale2x(x):  # nearest neighbour, matches F.interpolate(scale_factor=2)
    # TODO(synk): fuse the 2x nearest upsample into the lateral kernel epilogue
    # (only the +residual add is currently fused into the GEMM).
    return jnp.repeat(jnp.repeat(x, 2, axis=1), 2, axis=2)


# ----------------------------------------------------------------------------
# Deterministic synthetic parameters (ResNet-50 + FPN shapes).
# TODO(synk): PyTorch default training-mode BatchNorm uses batch statistics;
#             here inference-mode BN (running stats) is folded into w/bias.
# ----------------------------------------------------------------------------
class _Keys:
    def __init__(self, key):
        self._key = key

    def __call__(self):
        self._key, sub = jax.random.split(self._key)
        return sub


def _conv_w(kg, kh, kw, cin, cout):
    fan_in = kh * kw * cin
    return jax.random.normal(kg(), (kh, kw, cin, cout), jnp.float32) * (2.0 / fan_in) ** 0.5


def _conv_bn(kg, kh, kw, cin, cout, eps=1e-5):
    w = _conv_w(kg, kh, kw, cin, cout)
    gamma = 1.0 + 0.05 * jax.random.normal(kg(), (cout,), jnp.float32)
    beta = 0.05 * jax.random.normal(kg(), (cout,), jnp.float32)
    mean = 0.05 * jax.random.normal(kg(), (cout,), jnp.float32)
    var = 1.0 + 0.05 * jax.random.uniform(kg(), (cout,), jnp.float32)
    scale = gamma / jnp.sqrt(var + eps)
    bias = beta - mean * scale
    return {"w": w * scale, "b": bias}          # BN scale folded into weights


def _bottleneck(kg, inplanes, planes, has_ds):
    p = {
        "c1": _conv_bn(kg, 1, 1, inplanes, planes),
        "c2": _conv_bn(kg, 3, 3, planes, planes),
        "c3": _conv_bn(kg, 1, 1, planes, planes * 4),
    }
    if has_ds:
        p["ds"] = _conv_bn(kg, 1, 1, inplanes, planes * 4)
    return p


def _layer(kg, inplanes, planes, blocks):
    ps = [_bottleneck(kg, inplanes, planes, True)]
    for _ in range(blocks - 1):
        ps.append(_bottleneck(kg, planes * 4, planes, False))
    return ps


def init_params(key):
    kg = _Keys(key)
    fpn = 256
    params = {
        "stem": _conv_bn(kg, 7, 7, 3, 64),
        "layer1": _layer(kg, 64, 64, 3),
        "layer2": _layer(kg, 256, 128, 4),
        "layer3": _layer(kg, 512, 256, 6),
        "layer4": _layer(kg, 1024, 512, 3),
    }
    for name, cin in (("lat5", 2048), ("lat4", 1024), ("lat3", 512), ("lat2", 256)):
        params[name] = {
            "w": _conv_w(kg, 1, 1, cin, fpn),
            "b": 0.05 * jax.random.normal(kg(), (fpn,), jnp.float32),
        }
    return params


# ----------------------------------------------------------------------------
# Forward pass
# ----------------------------------------------------------------------------
def bottleneck_fwd(x, p, stride):
    # TODO(synk): fuse whole bottleneck blocks (esp. layer3/4 small-M cases)
    # into one pallas_call holding weights + intermediates in VMEM scratch.
    identity = x
    out = conv_bn_act(x, p["c1"]["w"], p["c1"]["b"], stride=1, padding=0, relu=True)
    out = conv_bn_act(out, p["c2"]["w"], p["c2"]["b"], stride=stride, padding=1, relu=True)
    if "ds" in p:
        identity = conv_bn_act(x, p["ds"]["w"], p["ds"]["b"], stride=stride,
                               padding=0, relu=False)
    # conv3 + bn3 + residual add + final ReLU fused in one kernel epilogue
    out = conv_bn_act(out, p["c3"]["w"], p["c3"]["b"], stride=1, padding=0,
                      relu=True, residual=identity)
    return out


def _run_layer(h, blocks, first_stride):
    for bi, blk in enumerate(blocks):
        h = bottleneck_fwd(h, blk, first_stride if bi == 0 else 1)
    return h


def resnet50_fpn_forward(x_nchw, params):
    # TODO(synk): fold the NCHW->NHWC transpose + f32->bf16 cast into the stem.
    x = jnp.transpose(x_nchw, (0, 2, 3, 1)).astype(jnp.bfloat16)   # NCHW -> NHWC
    h = conv_bn_act(x, params["stem"]["w"], params["stem"]["b"],
                    stride=2, padding=3, relu=True)
    h = max_pool_3x3_s2_p1(h)
    c2 = _run_layer(h, params["layer1"], 1)
    c3 = _run_layer(c2, params["layer2"], 2)
    c4 = _run_layer(c3, params["layer3"], 2)
    c5 = _run_layer(c4, params["layer4"], 2)

    p5 = conv_bn_act(c5, params["lat5"]["w"], params["lat5"]["b"],
                     relu=False, out_dtype=jnp.float32)
    p4 = conv_bn_act(c4, params["lat4"]["w"], params["lat4"]["b"],
                     relu=False, residual=upscale2x(p5), out_dtype=jnp.float32)
    p3 = conv_bn_act(c3, params["lat3"]["w"], params["lat3"]["b"],
                     relu=False, residual=upscale2x(p4), out_dtype=jnp.float32)
    p2 = conv_bn_act(c2, params["lat2"]["w"], params["lat2"]["b"],
                     relu=False, residual=upscale2x(p3), out_dtype=jnp.float32)
    to_nchw = lambda t: jnp.transpose(t, (0, 3, 1, 2))             # NHWC -> NCHW
    return [to_nchw(p2), to_nchw(p3), to_nchw(p4), to_nchw(p5)]


if __name__ == "__main__":
    key = jax.random.PRNGKey(0)
    pkey, xkey = jax.random.split(key)
    params = init_params(pkey)
    x = jax.random.normal(xkey, (2, 3, 64, 64), jnp.float32)       # NCHW input

    # sanity check 1: fused bf16 Pallas GEMM vs plain jnp (bf16 operands)
    a = jax.random.normal(jax.random.PRNGKey(1), (32, 48), jnp.float32)
    w = jax.random.normal(jax.random.PRNGKey(2), (48, 64), jnp.float32)
    b = jax.random.normal(jax.random.PRNGKey(3), (64,), jnp.float32)
    got = fused_matmul(a, w, b, relu=True, out_dtype=jnp.float32)
    a16 = a.astype(jnp.bfloat16).astype(jnp.float32)
    w16 = w.astype(jnp.bfloat16).astype(jnp.float32)
    want = jnp.maximum(a16 @ w16 + b, 0.0)
    assert jnp.allclose(got, want, rtol=1e-2, atol=1e-2), "fused GEMM mismatch"

    # sanity check 2: in-kernel tap-accumulation 3x3 conv vs lax.conv reference
    xt = jax.random.normal(jax.random.PRNGKey(4), (1, 8, 8, 16), jnp.float32)
    wt = jax.random.normal(jax.random.PRNGKey(5), (3, 3, 16, 32), jnp.float32) * 0.1
    bt = jax.random.normal(jax.random.PRNGKey(6), (32,), jnp.float32) * 0.1
    got3 = conv3x3_tap(xt, wt, bt, relu=True, out_dtype=jnp.float32)[..., :32]
    ref3 = lax.conv_general_dilated(
        xt.astype(jnp.bfloat16).astype(jnp.float32),
        wt.astype(jnp.bfloat16).astype(jnp.float32),
        (1, 1), "SAME", dimension_numbers=("NHWC", "HWIO", "NHWC"))
    ref3 = jnp.maximum(ref3 + bt, 0.0)
    assert jnp.allclose(got3, ref3, rtol=5e-2, atol=5e-2), "tap conv mismatch"

    forward = jax.jit(resnet50_fpn_forward)
    feats = forward(x, params)
    feats = jax.block_until_ready(feats)
    expected = [(2, 256, 16, 16), (2, 256, 8, 8), (2, 256, 4, 4), (2, 256, 2, 2)]
    assert [tuple(f.shape) for f in feats] == expected, [f.shape for f in feats]
    assert all(bool(jnp.all(jnp.isfinite(f))) for f in feats)
    print("KERNEL_OK")
</pallas_src>

<mosaic_0001>
module attributes {stable_mosaic.version = 11 : i64} {
  func.func @_gemm_bias_act_kernel(%arg0: i32, %arg1: memref<32x48xbf16, #tpu.memory_space<vmem>>, %arg2: memref<48x128xbf16, #tpu.memory_space<vmem>>, %arg3: memref<1x128xf32, #tpu.memory_space<vmem>>, %arg4: memref<32x128xf32, #tpu.memory_space<vmem>>) attributes {dimension_semantics = [#tpu.dimension_semantics<parallel>], iteration_bounds = array<i64: 1>, scalar_prefetch = 0 : i64, scratch_operands = 0 : i64, tpu.core_type = #tpu.core_type<tc>, window_params = [{pipeline_mode = #tpu.pipeline_mode<synchronous>, transform_indices = @transform_0, window_bounds = array<i64: 32, 48>}, {transform_indices = @transform_1, window_bounds = array<i64: 48, 128>}, {transform_indices = @transform_2, window_bounds = array<i64: 1, 128>}, {transform_indices = @transform_3, window_bounds = array<i64: 32, 128>}]} {
    %c0 = arith.constant 0 : index
    %c0_0 = arith.constant 0 : index
    %0 = vector.load %arg1[%c0, %c0_0] : memref<32x48xbf16, #tpu.memory_space<vmem>>, vector<32x48xbf16>
    %c0_1 = arith.constant 0 : index
    %c0_2 = arith.constant 0 : index
    %1 = vector.load %arg2[%c0_1, %c0_2] : memref<48x128xbf16, #tpu.memory_space<vmem>>, vector<48x128xbf16>
    %cst = arith.constant dense<0.000000e+00> : vector<32x128xf32>
    %2 = tpu.matmul %0, %1, %cst {dimension_numbers = #tpu.dot_dimension_numbers<[1], [0], [0], [1], [0, 0, 1, 1], [], []>} : vector<32x48xbf16>, vector<48x128xbf16>, vector<32x128xf32> -> vector<32x128xf32>
    %c0_3 = arith.constant 0 : index
    %c0_4 = arith.constant 0 : index
    %3 = vector.load %arg3[%c0_3, %c0_4] : memref<1x128xf32, #tpu.memory_space<vmem>>, vector<1x128xf32>
    %4 = vector.broadcast %3 : vector<1x128xf32> to vector<32x128xf32>
    %5 = arith.addf %2, %4 : vector<32x128xf32>
    %cst_5 = arith.constant 0.000000e+00 : f32
    %6 = vector.broadcast %cst_5 : f32 to vector<32x128xf32>
    %7 = arith.maximumf %5, %6 : vector<32x128xf32>
    %c0_6 = arith.constant 0 : index
    %c0_7 = arith.constant 0 : index
    %8 = vector.load %arg4[%c0_6, %c0_7] : memref<32x128xf32, #tpu.memory_space<vmem>>, vector<32x128xf32>
    tpu.vector_store %arg4[%c0_6, %c0_7], %7 {strides = array<i32>} : memref<32x128xf32, #tpu.memory_space<vmem>>, vector<32x128xf32>,
    return
  }
  func.func @transform_0(%arg0: i32) -> (i32, i32) {
    %c0_i32 = arith.constant 0 : i32
    %c0_i32_0 = arith.constant 0 : i32
    %c0_i32_1 = arith.constant 0 : i32
    return %c0_i32, %c0_i32_0 : i32, i32
  }
  func.func @transform_1(%arg0: i32) -> (i32, i32) {
    %c0_i32 = arith.constant 0 : i32
    %c0_i32_0 = arith.constant 0 : i32
    return %c0_i32, %arg0 : i32, i32
  }
  func.func @transform_2(%arg0: i32) -> (i32, i32) {
    %c0_i32 = arith.constant 0 : i32
    %c0_i32_0 = arith.constant 0 : i32
    return %c0_i32, %arg0 : i32, i32
  }
  func.func @transform_3(%arg0: i32) -> (i32, i32) {
    %c0_i32 = arith.constant 0 : i32
    %c0_i32_0 = arith.constant 0 : i32
    return %c0_i32, %arg0 : i32, i32
  }
}

</mosaic_0001>

<llo_original>
// kernel: tpu_custom_call.1
$region0: #{tpu_custom_call.1}
  #allocation0 [shape = 'u32[]', space=smem, size = 0x4, offset = 0x4, fixed_abs, tag = 'smem constant byte address 0x4 - core index']
  #allocation1 [shape = 'u32[144,128]{1,0:T(1,128)}', space=vmem, size = 0x12000, scoped, tag = 'internal scratch']
  %s0 = inlined_call_operand.hbm [shape: bf16[32,48], index: 0, kind: input, shape index: {}]
  %s1 = inlined_call_operand.hbm [shape: bf16[48,128], index: 1, kind: input, shape index: {}]
  %s2 = inlined_call_operand.vmem [shape: f32[1,128], index: 2, kind: input, shape index: {}]
  %s3 = inlined_call_operand.hbm [shape: f32[32,128], index: 3, kind: output, shape index: {}]
  %s4 = sld [smem:[#allocation0]]
  $region30: #{tpu_custom_call.1} parent=0
    _
  %s6 = ssub.s32 1, %s4
  %s7 = scalar_select 0, %s6, %s4
  $region1: #{tpu_custom_call.1} parent=0
    #allocation2 [shape = 'u8[8192]{0}', space=vmem, size = 0x2000, scoped, tag = 'input window, operand 0, single buffered']
    #allocation3 [shape = 's32[1]{0}', space=sflag, size = 0x4, scoped, tag = 'scoped memory for tpu_custom_call.1']
    #allocation4 [shape = 's32[1]{0}', space=sflag, size = 0x4, scoped, tag = 'scoped memory for tpu_custom_call.1']
    #allocation5 [shape = 'u8[12288]{0}', space=vmem, size = 0x3000, scoped, tag = 'input window, operand 1, single buffered']
    #allocation6 [shape = 's32[1]{0}', space=sflag, size = 0x4, scoped, tag = 'scoped memory for tpu_custom_call.1']
    #allocation7 [shape = 'u8[16384]{0}', space=vmem, size = 0x4000, scoped, tag = 'output window, operand 0, single buffered']
    %8 = vsyncpa [#allocation3], 0
    %9 = vsyncpa [#allocation6], 0
    %10 = vsyncpa [#allocation4], 0
    // Predicated region
    $region2: #{tpu_custom_call.1} parent=1 // pred_check
      _
    $region3: #{tpu_custom_call.1} parent=1 // pred_check_branch
      %12 = sbr.rel (0) target = $region5
    $region4: #{tpu_custom_call.1} parent=1 // pred_region
      %s14 = ssub.s32 256, 256
      %15 = vsyncadd [#allocation3], %s14
      %s16 = sshll.u32 [#allocation2], 4
      %s17 = int_to_ptr.vmem [resolvable:$true] %s16
      %22 = dma.hbm_to_vmem [thread:$0]  %s0, 256, %s17, [#allocation3], 64, 64, 4
    $region5: #{tpu_custom_call.1} parent=1 // pred_fallthru
      _
    // Predicated region
    $region6: #{tpu_custom_call.1} parent=1 // pred_check
      _
    $region7: #{tpu_custom_call.1} parent=1 // pred_check_branch
      %24 = sbr.rel (0) target = $region9
    $region8: #{tpu_custom_call.1} parent=1 // pred_region
      %s26 = ssub.s32 384, 384
      %27 = vsyncadd [#allocation6], %s26
      %s28 = sshll.u32 [#allocation5], 4
      %s29 = int_to_ptr.vmem [resolvable:$true] %s28
      %34 = dma.hbm_to_vmem [thread:$0]  %s1, 384, %s29, [#allocation6], 64, 64, 4
    $region9: #{tpu_custom_call.1} parent=1 // pred_fallthru
      _
    // Predicated region
    $region10: #{tpu_custom_call.1} parent=1 // pred_check
      _
    $region11: #{tpu_custom_call.1} parent=1 // pred_check_branch
      %36 = sbr.rel (0) target = $region13
    $region12: #{tpu_custom_call.1} parent=1 // pred_region
      _
    $region13: #{tpu_custom_call.1} parent=1 // pred_fallthru
      _
    // Predicated region
    $region14: #{tpu_custom_call.1} parent=1 // pred_check
      _
    $region15: #{tpu_custom_call.1} parent=1 // pred_check_branch
      %38 = sbr.rel (0) target = $region17
    $region16: #{tpu_custom_call.1} parent=1 // pred_region
      %39 = dma.done [#allocation3], 256
    $region17: #{tpu_custom_call.1} parent=1 // pred_fallthru
      _
    // Predicated region
    $region18: #{tpu_custom_call.1} parent=1 // pred_check
      _
    $region19: #{tpu_custom_call.1} parent=1 // pred_check_branch
      %41 = sbr.rel (0) target = $region21
    $region20: #{tpu_custom_call.1} parent=1 // pred_region
      %42 = dma.done [#allocation6], 384
    $region21: #{tpu_custom_call.1} parent=1 // pred_fallthru
      _
    %v44 = vld [vmem:[#allocation2] sm:$0xf]
    %v45 = vld [vmem:[#allocation2 + $0x4] sm:$0xf]
    %v46 = vld [vmem:[#allocation2 + $0x8] sm:$0xf]
    %v47 = vld [vmem:[#allocation2 + $0xc] sm:$0xf]
    %v48 = vld [vmem:[#allocation5] sm:$0xf]
    %v49 = vld [vmem:[#allocation5 + $0x4] sm:$0xf]
    %v50 = vld [vmem:[#allocation5 + $0x8] sm:$0xf]
    %v51 = vld [vmem:[#allocation5 + $0xc] sm:$0xf]
    %v52 = vld [vmem:[#allocation5 + $0x10] sm:$0xf]
    %v53 = vld [vmem:[#allocation5 + $0x14] sm:$0xf]
    %v54 = vld [vmem:[%s2] sm:$0x1]
    %v56 = vlaneseq
    %v57 = vshrl.u32 %v56, 7
    %v58 = vsub.s32 0, %v57
    %v59 = vrot.slane %v54, %v58
    %v65 = vunpack.c.l.b16 %v44
    %v66 = vunpack.c.l.b16 %v45
    %v67 = vunpack.c.l.b16 %v46
    %v68 = vunpack.c.l.b16 %v47
    %v69 = vpack.c.b16 %v66, %v65
    %v70 = vpack.c.b16 %v68, %v67
    %v77 = vunpack.c.l.b16 %v48
    %v78 = vunpack.c.l.b16 %v49
    %v79 = vunpack.c.l.b16 %v50
    %v80 = vunpack.c.l.b16 %v51
    %v81 = vunpack.c.l.b16 %v52
    %v82 = vunpack.c.l.b16 %v53
    %v83 = vpack.c.b16 %v78, %v77
    %v84 = vpack.c.b16 %v80, %v79
    %v85 = vpack.c.b16 %v82, %v81
    %vm89 = vcmask 392192
    %v91 = vsel %vm89, %v69, 0
    %v94 = vsel %vm89, %v70, 0
    %96 = vmatprep.subr.bf16.mxu0 0
    %97 = vmatpush1.bf16.msra.mxu0 0
    %98 = vmatprep.subr.bf16.mxu0 0
    %99 = vmatpush1.bf16.msra.mxu0 0
    %100 = vmatprep.subr.bf16.mxu0 0
    %101 = vmatpush1.bf16.msra.mxu0 0
    %102 = vmatprep.subr.bf16.mxu0 0
    %103 = vmatpush1.bf16.msra.mxu0 0
    %104 = vmatprep.subr.bf16.mxu0 0
    %105 = vmatpush1.bf16.msra.mxu0 0
    %106 = vmatprep.subr.bf16.mxu0 0
    %107 = vmatpush1.bf16.msra.mxu0 %v85
    %108 = vmatprep.subr.bf16.mxu0 0
    %109 = vmatpush1.bf16.msra.mxu0 %v84
    %110 = vmatprep.subr.bf16.mxu0 0
    %111 = vmatpush1.bf16.msra.mxu0 %v83
    %112 = vmatprep.subr.bf16.mxu0 0
    %113 = vmatpush2.bf16.msra.mxu0 0
    %114 = vmatprep.subr.bf16.mxu0 0
    %115 = vmatpush2.bf16.msra.mxu0 0
    %116 = vmatprep.subr.bf16.mxu0 0
    %117 = vmatpush2.bf16.msra.mxu0 0
    %118 = vmatprep.subr.bf16.mxu0 0
    %119 = vmatpush2.bf16.msra.mxu0 0
    %120 = vmatprep.subr.bf16.mxu0 0
    %121 = vmatpush2.bf16.msra.mxu0 0
    %122 = vmatprep.subr.bf16.mxu0 0
    %123 = vmatpush2.bf16.msra.mxu0 0
    %124 = vmatprep.subr.bf16.mxu0 0
    %125 = vmatpush2.bf16.msra.mxu0 0
    %126 = vmatprep.subr.bf16.mxu0 0
    %127 = vmatpush2.bf16.msra.mxu0 0
    %128 = vmatprep.mubr.bf16.mxu0 0
    %129 = vmatmul.mubr.bf16.gmra.mxu0 %v91
    %v130 = vpop.f32.mrf.mxu0
    %v131 = vadd.f32 %v59, %v130
    %v132 = vpop.f32.mrf.mxu0
    %v133 = vpop.f32.mrf.mxu0
    %v134 = vadd.f32 %v59, %v133
    %v135 = vpop.f32.mrf.mxu0
    %136 = vmatprep.mubr.bf16.mxu0 0
    %137 = vmatmul.mubr.bf16.gmra.mxu0 %v94
    %v138 = vpop.f32.mrf.mxu0
    %v139 = vadd.f32 %v59, %v138
    %v140 = vpop.f32.mrf.mxu0
    %v141 = vpop.f32.mrf.mxu0
    %v142 = vadd.f32 %v59, %v141
    %v143 = vpop.f32.mrf.mxu0
    %144 = vdwg.mxu0
    %v145 = vmax.f32 %v131, 0.0
    %v146 = vmax.f32 %v134, 0.0
    %v147 = vmax.f32 %v139, 0.0
    %v148 = vmax.f32 %v142, 0.0
    %149 = vst [vmem:[#allocation7] sm:$0xff] %v145
    %150 = vst [vmem:[#allocation7 + $0x8] sm:$0xff] %v146
    %151 = vst [vmem:[#allocation7 + $0x10] sm:$0xff] %v147
    %152 = vst [vmem:[#allocation7 + $0x18] sm:$0xff] %v148
    // Predicated region
    $region22: #{tpu_custom_call.1} parent=1 // pred_check
      _
    $region23: #{tpu_custom_call.1} parent=1 // pred_check_branch
      %154 = sbr.rel (0) target = $region25
    $region24: #{tpu_custom_call.1} parent=1 // pred_region
      %s156 = ssub.s32 512, 512
      %157 = vsyncadd [#allocation4], %s156
      %s158 = sshll.u32 [#allocation7], 4
      %s159 = int_to_ptr.vmem [resolvable:$true] %s158
      %164 = dma.vmem_to_hbm [thread:$0]  %s159, 512, %s3, [#allocation4], 128, 128, 8
    $region25: #{tpu_custom_call.1} parent=1 // pred_fallthru
      _
    // Predicated region
    $region26: #{tpu_custom_call.1} parent=1 // pred_check
      _
    $region27: #{tpu_custom_call.1} parent=1 // pred_check_branch
      %166 = sbr.rel (0) target = $region29
    $region28: #{tpu_custom_call.1} parent=1 // pred_region
      %167 = dma.done [#allocation4], 512
    $region29: #{tpu_custom_call.1} parent=1 // pred_fallthru
      _
    %168 = vsyncpa [#allocation3], 1
    %169 = vsyncpa [#allocation6], 1
    %170 = vsyncpa [#allocation4], 1

</llo_original>
